<compile_context>
chip_gen: v7x
topology: tpu7x:2x2x1
jax: 0.10.0
libtpu: 0.0.40
codegen_flags: <defaults>
</compile_context>

<pallas_src>
import functools

import jax
import jax.numpy as jnp
from jax import lax
from jax.experimental import pallas as pl
from jax.experimental.pallas import tpu as pltpu


# ----------------------------------------------------------------------------
# Fused encoder kernel (both passes): dense + tanh + dropout + masked mean pool
# grid = (n_pass=2, B // TB)
# ----------------------------------------------------------------------------
def _encoder_kernel(seed_ref, drop_ref, x_ref, mask_ref, w_ref, b_ref, out_ref):
    pass_id = pl.program_id(0)        # 0 = query pass, 1 = context pass
    tile_id = pl.program_id(1)        # batch tile index
    _, TB, S, H = x_ref.shape

    # ---- dense + tanh (MXU: bf16 inputs, f32 accumulate) --------------------
    x = x_ref[0].reshape(TB * S, H)                                   # bf16
    h = jnp.dot(x, w_ref[...], preferred_element_type=jnp.float32)    # [TB*S,H]
    h = jnp.tanh(h + b_ref[...].astype(jnp.float32))

    # ---- dropout (mirrors change_dropout(model, dropout_list[pass_id])) -----
    # Counter-based hash PRNG (murmur-style fmix32) built from pure jnp ops so
    # it lowers both on Mosaic and in the Pallas interpreter; re-seeded per
    # (pass, batch-tile) so tiles never draw correlated masks.
    p = drop_ref[pass_id]                                             # f32
    seed = (seed_ref[pass_id].astype(jnp.uint32)
            + jnp.uint32(0x9E3779B9) * (tile_id + 1).astype(jnp.uint32))
    row = lax.broadcasted_iota(jnp.int32, (TB * S, H), 0).astype(jnp.uint32)
    col = lax.broadcasted_iota(jnp.int32, (TB * S, H), 1).astype(jnp.uint32)
    bits = (row * jnp.uint32(0x85EBCA6B)) ^ (col * jnp.uint32(0xC2B2AE35)) ^ seed
    bits = bits ^ (bits >> 16)
    bits = bits * jnp.uint32(0x7FEB352D)
    bits = bits ^ (bits >> 15)
    bits = bits * jnp.uint32(0x846CA68B)
    bits = bits ^ (bits >> 16)
    u = (bits >> 8).astype(jnp.float32) * jnp.float32(1.0 / (1 << 24))  # [0,1)
    inv_keep = 1.0 / (1.0 - p)
    h = jnp.where(u >= p, h * inv_keep, 0.0)        # single fused select, no
                                                    # separate f32 keep-mask

    # ---- attention-mask-weighted mean pooling -------------------------------
    h = h.reshape(TB, S, H)
    m = mask_ref[0].astype(jnp.float32)                               # [TB, S]
    summed = jnp.sum(h * m[:, :, None], axis=1)                       # [TB, H]
    denom = jnp.maximum(jnp.sum(m, axis=1, keepdims=True), 1.0)       # [TB, 1]
    out_ref[0] = summed / denom


def encode_pair(x_all, mask_all, w, b, seeds, drop_ps, *, batch_tile=None):
    """x_all: [2, B, S, H] bf16, mask_all: [2, B, S] f32 -> [2, B, H] f32."""
    n_pass, B, S, H = x_all.shape
    if batch_tile is None:
        batch_tile = min(B, 64) if B % 8 == 0 else B
    assert B % batch_tile == 0
    TB = batch_tile

    return pl.pallas_call(
        _encoder_kernel,
        out_shape=jax.ShapeDtypeStruct((n_pass, B, H), jnp.float32),
        grid=(n_pass, B // TB),
        in_specs=[
            pl.BlockSpec(memory_space=pltpu.MemorySpace.SMEM),     # seeds
            pl.BlockSpec(memory_space=pltpu.MemorySpace.SMEM),     # dropout ps
            pl.BlockSpec((1, TB, S, H), lambda p, i: (p, i, 0, 0)),  # tokens
            pl.BlockSpec((1, TB, S), lambda p, i: (p, i, 0)),        # mask
            pl.BlockSpec((H, H), lambda p, i: (0, 0)),               # W resident
            pl.BlockSpec((1, H), lambda p, i: (0, 0)),               # b resident
        ],
        out_specs=pl.BlockSpec((1, TB, H), lambda p, i: (p, i, 0)),
        compiler_params=pltpu.CompilerParams(
            dimension_semantics=("parallel", "parallel"),
            vmem_limit_bytes=48 * 1024 * 1024),
    )(seeds, drop_ps, x_all, mask_all, w, b)


# ----------------------------------------------------------------------------
# Pair loss kernel: cosine-sim InfoNCE over the in-batch pairs
# ----------------------------------------------------------------------------
# TODO(synk): exact definition of Losses.ELOSS is not available in the source;
# implemented as the standard in-batch contrastive (InfoNCE) embedding loss.
def _pair_loss_kernel(q_ref, c_ref, out_ref, *, scale):
    q = q_ref[...].astype(jnp.float32)
    c = c_ref[...].astype(jnp.float32)
    # fold the temperature into the normalized queries: B*H mul instead of B*B
    qn = q * (lax.rsqrt(jnp.sum(q * q, axis=-1, keepdims=True) + 1e-12) * scale)
    cn = c * lax.rsqrt(jnp.sum(c * c, axis=-1, keepdims=True) + 1e-12)

    sim = jnp.dot(qn, cn.T, preferred_element_type=jnp.float32)       # [B, B]
    B = sim.shape[0]

    row = lax.broadcasted_iota(jnp.int32, (B, B), 0)
    col = lax.broadcasted_iota(jnp.int32, (B, B), 1)
    pos = jnp.sum(jnp.where(row == col, sim, 0.0), axis=1, keepdims=True)

    m = jnp.max(sim, axis=1, keepdims=True)
    lse = m + jnp.log(jnp.sum(jnp.exp(sim - m), axis=1, keepdims=True))

    loss = jnp.sum(lse - pos) * (1.0 / B)
    out_ref[...] = jnp.reshape(loss, (1, 1))


def pair_loss(q_emb, c_emb, *, scale=20.0):
    out = pl.pallas_call(
        functools.partial(_pair_loss_kernel, scale=float(scale)),
        out_shape=jax.ShapeDtypeStruct((1, 1), jnp.float32),
        in_specs=[
            pl.BlockSpec(memory_space=pltpu.MemorySpace.VMEM),
            pl.BlockSpec(memory_space=pltpu.MemorySpace.VMEM),
        ],
        out_specs=pl.BlockSpec(memory_space=pltpu.MemorySpace.VMEM),
    )(q_emb, c_emb)
    return out[0, 0]


# ----------------------------------------------------------------------------
# PairLoss wrapper (mirrors the PyTorch module's forward signature)
# ----------------------------------------------------------------------------
class PairLossPallas:
    def __init__(self, emb_table, w, b, dropout_list=(0.1, 0.2), scale=20.0):
        # bf16 params: halves gather/weight HBM traffic and feeds the MXU at
        # full rate (f32 accumulation happens inside the kernel).
        self.emb_table = emb_table.astype(jnp.bfloat16)
        self.w = w.astype(jnp.bfloat16)
        self.b = b.astype(jnp.float32)
        self.dropout_list = dropout_list
        self.scale = scale

    def __call__(self, query_ids, query_attention_mask,
                 context_ids, context_attention_mask, logger=False, seed=0):
        # TODO(synk): embedding gather is still XLA-side glue; moving it into
        # the kernel (scalar-prefetch row gather from the HBM table) would
        # remove one full [B,S,H] HBM round trip.
        q_tok = self.emb_table[query_ids]                      # [B, S, H] bf16
        c_tok = self.emb_table[context_ids]                    # [B, S, H] bf16

        x_all = jnp.stack([q_tok, c_tok], axis=0)              # [2, B, S, H]
        mask_all = jnp.stack([query_attention_mask, context_attention_mask],
                             axis=0).astype(jnp.float32)       # [2, B, S]

        # change_dropout(model, dropout_list[0]) -> pass 0 (query)
        # change_dropout(model, dropout_list[1]) -> pass 1 (context)
        # TODO(synk): seed should vary per training step; fixed here for demo.
        seeds = jnp.array([2 * seed, 2 * seed + 1], dtype=jnp.int32)
        drop_ps = jnp.array(self.dropout_list, dtype=jnp.float32)

        emb = encode_pair(x_all, mask_all, self.w, self.b, seeds, drop_ps)
        q_emb, c_emb = emb[0], emb[1]                          # [B, H] each

        output = (pair_loss(q_emb, c_emb, scale=self.scale),)
        if logger:
            output += (q_emb, c_emb)
        return output


if __name__ == "__main__":
    B, S, H, V = 8, 8, 128, 64

    key = jax.random.PRNGKey(0)
    k_emb, k_w, k_b, k_qid, k_cid = jax.random.split(key, 5)

    # Deterministic synthetic "model" parameters.
    emb_table = jax.random.normal(k_emb, (V, H), dtype=jnp.float32) * 0.02
    w = jax.random.normal(k_w, (H, H), dtype=jnp.float32) * (1.0 / H ** 0.5)
    b = jax.random.normal(k_b, (1, H), dtype=jnp.float32) * 0.01

    query_ids = jax.random.randint(k_qid, (B, S), 0, V, dtype=jnp.int32)
    context_ids = jax.random.randint(k_cid, (B, S), 0, V, dtype=jnp.int32)
    # mask out the last two query tokens of batch element 1, last of context 0
    query_mask = jnp.ones((B, S), dtype=jnp.float32).at[1, -2:].set(0.0)
    context_mask = jnp.ones((B, S), dtype=jnp.float32).at[0, -1:].set(0.0)

    module = PairLossPallas(emb_table, w, b, dropout_list=(0.1, 0.2))
    loss, q_emb, c_emb = module(query_ids, query_mask,
                                context_ids, context_mask, logger=True)

    jax.block_until_ready((loss, q_emb, c_emb))
    assert q_emb.shape == (B, H) and c_emb.shape == (B, H)
    assert bool(jnp.isfinite(loss))
    print("KERNEL_OK")
</pallas_src>

<mosaic_0001>
module attributes {stable_mosaic.version = 11 : i64} {
  func.func @_encoder_kernel(%arg0: i32, %arg1: i32, %arg2: memref<2xi32, #tpu.memory_space<smem>>, %arg3: memref<2xf32, #tpu.memory_space<smem>>, %arg4: memref<1x8x8x128xbf16, #tpu.memory_space<vmem>>, %arg5: memref<1x8x8xf32, #tpu.memory_space<vmem>>, %arg6: memref<128x128xbf16, #tpu.memory_space<vmem>>, %arg7: memref<1x128xf32, #tpu.memory_space<vmem>>, %arg8: memref<1x8x128xf32, #tpu.memory_space<vmem>>) attributes {dimension_semantics = [#tpu.dimension_semantics<parallel>, #tpu.dimension_semantics<parallel>], iteration_bounds = array<i64: 2, 1>, scalar_prefetch = 0 : i64, scratch_operands = 0 : i64, tpu.core_type = #tpu.core_type<tc>, window_params = [{transform_indices = @transform_0, window_bounds = array<i64: 2>}, {transform_indices = @transform_1, window_bounds = array<i64: 2>}, {transform_indices = @transform_2, window_bounds = array<i64: 1, 8, 8, 128>}, {transform_indices = @transform_3, window_bounds = array<i64: 1, 8, 8>}, {pipeline_mode = #tpu.pipeline_mode<synchronous>, transform_indices = @transform_4, window_bounds = array<i64: 128, 128>}, {pipeline_mode = #tpu.pipeline_mode<synchronous>, transform_indices = @transform_5, window_bounds = array<i64: 1, 128>}, {transform_indices = @transform_6, window_bounds = array<i64: 1, 8, 128>}]} {
    %c0 = arith.constant 0 : index
    %c0_0 = arith.constant 0 : index
    %c0_1 = arith.constant 0 : index
    %c0_2 = arith.constant 0 : index
    %0 = vector.load %arg4[%c0, %c0_0, %c0_1, %c0_2] : memref<1x8x8x128xbf16, #tpu.memory_space<vmem>>, vector<1x8x8x128xbf16>
    %1 = vector.shape_cast %0 : vector<1x8x8x128xbf16> to vector<8x8x128xbf16>
    %2 = vector.shape_cast %1 : vector<8x8x128xbf16> to vector<64x128xbf16>
    %c0_3 = arith.constant 0 : index
    %c0_4 = arith.constant 0 : index
    %3 = vector.load %arg6[%c0_3, %c0_4] : memref<128x128xbf16, #tpu.memory_space<vmem>>, vector<128x128xbf16>
    %cst = arith.constant dense<0.000000e+00> : vector<64x128xf32>
    %4 = tpu.matmul %2, %3, %cst {dimension_numbers = #tpu.dot_dimension_numbers<[1], [0], [0], [1], [0, 0, 1, 1], [], []>} : vector<64x128xbf16>, vector<128x128xbf16>, vector<64x128xf32> -> vector<64x128xf32>
    %c0_5 = arith.constant 0 : index
    %c0_6 = arith.constant 0 : index
    %5 = vector.load %arg7[%c0_5, %c0_6] : memref<1x128xf32, #tpu.memory_space<vmem>>, vector<1x128xf32>
    %6 = vector.broadcast %5 : vector<1x128xf32> to vector<64x128xf32>
    %7 = arith.addf %4, %6 : vector<64x128xf32>
    %8 = math.tanh %7 : vector<64x128xf32>
    %9 = arith.index_cast %arg0 : i32 to index
    %10 = memref.load %arg3[%9] : memref<2xf32, #tpu.memory_space<smem>>
    %11 = arith.index_cast %arg0 : i32 to index
    %12 = memref.load %arg2[%11] : memref<2xi32, #tpu.memory_space<smem>>
    %c1_i32 = arith.constant 1 : i32
    %13 = arith.addi %arg1, %c1_i32 : i32
    %c-1640531527_i32 = arith.constant -1640531527 : i32
    %14 = arith.muli %c-1640531527_i32, %13 : i32
    %15 = arith.addi %12, %14 : i32
    %16 = tpu.iota {dimensions = array<i32: 0>} : vector<64x128xi32>
    %17 = tpu.iota {dimensions = array<i32: 1>} : vector<64x128xi32>
    %c-2048144789_i32 = arith.constant -2048144789 : i32
    %18 = vector.broadcast %c-2048144789_i32 : i32 to vector<64x128xi32>
    %19 = arith.muli %16, %18 : vector<64x128xi32>
    %c-1028477387_i32 = arith.constant -1028477387 : i32
    %20 = vector.broadcast %c-1028477387_i32 : i32 to vector<64x128xi32>
    %21 = arith.muli %17, %20 : vector<64x128xi32>
    %22 = arith.xori %19, %21 : vector<64x128xi32>
    %23 = vector.broadcast %15 : i32 to vector<64x128xi32>
    %24 = arith.xori %22, %23 : vector<64x128xi32>
    %c16_i32 = arith.constant 16 : i32
    %25 = vector.broadcast %c16_i32 : i32 to vector<64x128xi32>
    %26 = arith.shrui %24, %25 : vector<64x128xi32>
    %27 = arith.xori %24, %26 : vector<64x128xi32>
    %c2146121005_i32 = arith.constant 2146121005 : i32
    %28 = vector.broadcast %c2146121005_i32 : i32 to vector<64x128xi32>
    %29 = arith.muli %27, %28 : vector<64x128xi32>
    %c15_i32 = arith.constant 15 : i32
    %30 = vector.broadcast %c15_i32 : i32 to vector<64x128xi32>
    %31 = arith.shrui %29, %30 : vector<64x128xi32>
    %32 = arith.xori %29, %31 : vector<64x128xi32>
    %c-2073254261_i32 = arith.constant -2073254261 : i32
    %33 = vector.broadcast %c-2073254261_i32 : i32 to vector<64x128xi32>
    %34 = arith.muli %32, %33 : vector<64x128xi32>
    %c16_i32_7 = arith.constant 16 : i32
    %35 = vector.broadcast %c16_i32_7 : i32 to vector<64x128xi32>
    %36 = arith.shrui %34, %35 : vector<64x128xi32>
    %37 = arith.xori %34, %36 : vector<64x128xi32>
    %c8_i32 = arith.constant 8 : i32
    %38 = vector.broadcast %c8_i32 : i32 to vector<64x128xi32>
    %39 = arith.shrui %37, %38 : vector<64x128xi32>
    %40 = arith.uitofp %39 : vector<64x128xi32> to vector<64x128xf32>
    %cst_8 = arith.constant 5.96046448E-8 : f32
    %41 = vector.broadcast %cst_8 : f32 to vector<64x128xf32>
    %42 = arith.mulf %40, %41 : vector<64x128xf32>
    %cst_9 = arith.constant 1.000000e+00 : f32
    %43 = arith.subf %cst_9, %10 : f32
    %cst_10 = arith.constant 1.000000e+00 : f32
    %44 = arith.divf %cst_10, %43 : f32
    %45 = vector.broadcast %10 : f32 to vector<64x128xf32>
    %46 = arith.cmpf oge, %42, %45 : vector<64x128xf32>
    %47 = vector.broadcast %44 : f32 to vector<64x128xf32>
    %48 = arith.mulf %8, %47 : vector<64x128xf32>
    %cst_11 = arith.constant 0.000000e+00 : f32
    %49 = vector.broadcast %cst_11 : f32 to vector<64x128xf32>
    %50 = arith.select %46, %48, %49 : vector<64x128xi1>, vector<64x128xf32>
    %51 = vector.shape_cast %50 : vector<64x128xf32> to vector<8x8x128xf32>
    %c0_12 = arith.constant 0 : index
    %c0_13 = arith.constant 0 : index
    %c0_14 = arith.constant 0 : index
    %52 = vector.load %arg5[%c0_12, %c0_13, %c0_14] : memref<1x8x8xf32, #tpu.memory_space<vmem>>, vector<1x8x8xf32>
    %53 = vector.shape_cast %52 : vector<1x8x8xf32> to vector<8x8xf32>
    %54 = vector.shape_cast %53 : vector<8x8xf32> to vector<8x8x1xf32>
    %55 = vector.broadcast %54 : vector<8x8x1xf32> to vector<8x8x128xf32>
    %56 = arith.mulf %51, %55 : vector<8x8x128xf32>
    %cst_15 = arith.constant dense<0.000000e+00> : vector<8x128xf32>
    %57 = vector.multi_reduction <add>, %56, %cst_15 [1] : vector<8x8x128xf32> to vector<8x128xf32>
    %cst_16 = arith.constant dense<0.000000e+00> : vector<8xf32>
    %58 = vector.multi_reduction <add>, %53, %cst_16 [1] : vector<8x8xf32> to vector<8xf32>
    %59 = vector.shape_cast %58 : vector<8xf32> to vector<8x1xf32>
    %cst_17 = arith.constant 1.000000e+00 : f32
    %60 = vector.broadcast %cst_17 : f32 to vector<8x1xf32>
    %61 = arith.maximumf %59, %60 : vector<8x1xf32>
    %62 = vector.broadcast %61 : vector<8x1xf32> to vector<8x128xf32>
    %63 = arith.divf %57, %62 : vector<8x128xf32>
    %c0_18 = arith.constant 0 : index
    %c0_19 = arith.constant 0 : index
    %c0_20 = arith.constant 0 : index
    %64 = vector.load %arg8[%c0_18, %c0_19, %c0_20] : memref<1x8x128xf32, #tpu.memory_space<vmem>>, vector<1x8x128xf32>
    %65 = vector.shape_cast %64 : vector<1x8x128xf32> to vector<8x128xf32>
    %66 = vector.shape_cast %63 : vector<8x128xf32> to vector<1x8x128xf32>
    tpu.vector_store %arg8[%c0_18, %c0_19, %c0_20], %66 {strides = array<i32>} : memref<1x8x128xf32, #tpu.memory_space<vmem>>, vector<1x8x128xf32>,
    return
  }
  func.func @transform_0(%arg0: i32, %arg1: i32) -> i32 {
    %c0_i32 = arith.constant 0 : i32
    %c0_i32_0 = arith.constant 0 : i32
    return %c0_i32 : i32
  }
  func.func @transform_1(%arg0: i32, %arg1: i32) -> i32 {
    %c0_i32 = arith.constant 0 : i32
    %c0_i32_0 = arith.constant 0 : i32
    return %c0_i32 : i32
  }
  func.func @transform_2(%arg0: i32, %arg1: i32) -> (i32, i32, i32, i32) {
    %c0_i32 = arith.constant 0 : i32
    %c0_i32_0 = arith.constant 0 : i32
    %c0_i32_1 = arith.constant 0 : i32
    return %arg0, %arg1, %c0_i32, %c0_i32_0 : i32, i32, i32, i32
  }
  func.func @transform_3(%arg0: i32, %arg1: i32) -> (i32, i32, i32) {
    %c0_i32 = arith.constant 0 : i32
    %c0_i32_0 = arith.constant 0 : i32
    return %arg0, %arg1, %c0_i32 : i32, i32, i32
  }
  func.func @transform_4(%arg0: i32, %arg1: i32) -> (i32, i32) {
    %c0_i32 = arith.constant 0 : i32
    %c0_i32_0 = arith.constant 0 : i32
    %c0_i32_1 = arith.constant 0 : i32
    return %c0_i32, %c0_i32_0 : i32, i32
  }
  func.func @transform_5(%arg0: i32, %arg1: i32) -> (i32, i32) {
    %c0_i32 = arith.constant 0 : i32
    %c0_i32_0 = arith.constant 0 : i32
    %c0_i32_1 = arith.constant 0 : i32
    return %c0_i32, %c0_i32_0 : i32, i32
  }
  func.func @transform_6(%arg0: i32, %arg1: i32) -> (i32, i32, i32) {
    %c0_i32 = arith.constant 0 : i32
    %c0_i32_0 = arith.constant 0 : i32
    return %arg0, %arg1, %c0_i32 : i32, i32, i32
  }
}

</mosaic_0001>

<llo_original>
// kernel: tpu_custom_call.1
$region0: #{tpu_custom_call.1}
  #allocation0 [shape = 'u32[]', space=smem, size = 0x4, offset = 0x4, fixed_abs, tag = 'smem constant byte address 0x4 - core index']
  #allocation1 [shape = 'u32[144,128]{1,0:T(1,128)}', space=vmem, size = 0x12000, scoped, tag = 'internal scratch']
  %s0 = inlined_call_operand.hbm [shape: s32[2], index: 0, kind: input, shape index: {}]
  %s1 = inlined_call_operand.vmem [shape: f32[2], index: 1, kind: input, shape index: {}]
  %s2 = inlined_call_operand.hbm [shape: bf16[2,8,8,128], index: 2, kind: input, shape index: {}]
  %s3 = inlined_call_operand.hbm [shape: f32[2,8,8], index: 3, kind: input, shape index: {}]
  %s4 = inlined_call_operand.hbm [shape: bf16[128,128], index: 4, kind: input, shape index: {}]
  %s5 = inlined_call_operand.vmem [shape: f32[1,128], index: 5, kind: input, shape index: {}]
  %s6 = inlined_call_operand.hbm [shape: f32[2,8,128], index: 6, kind: output, shape index: {}]
  %s7 = sld [smem:[#allocation0]]
  $region77: #{tpu_custom_call.1} parent=0
    _
  %s9 = ssub.s32 1, %s7
  %s10 = scalar_select 0, %s9, %s7
  $region1: #{tpu_custom_call.1} parent=0
    #allocation2 [shape = 'u8[512]{0}', space=smem, size = 0x200, scoped, tag = 'input window, operand 0, single buffered']
    #allocation3 [shape = 's32[2]{0}', space=sflag, size = 0x8, scoped, tag = 'scoped memory for tpu_custom_call.1']
    #allocation4 [shape = 's32[2]{0}', space=sflag, size = 0x8, scoped, tag = 'scoped memory for tpu_custom_call.1']
    #allocation5 [shape = 's32[2]{0}', space=sflag, size = 0x8, scoped, tag = 'scoped memory for tpu_custom_call.1']
    #allocation6 [shape = 's32[2]{0}', space=sflag, size = 0x8, scoped, tag = 'scoped memory for tpu_custom_call.1']
    #allocation7 [shape = 'u8[512]{0}', space=smem, size = 0x200, scoped, tag = 'input window, operand 1, single buffered']
    #allocation8 [shape = 'u8[32768]{0}', space=vmem, size = 0x8000, scoped, tag = 'input window, operand 2']
    #allocation9 [shape = 'u8[8192]{0}', space=vmem, size = 0x2000, scoped, tag = 'input window, operand 3']
    #allocation10 [shape = 's32[2]{0}', space=sflag, size = 0x8, scoped, tag = 'scoped memory for tpu_custom_call.1']
    #allocation11 [shape = 'u8[32768]{0}', space=vmem, size = 0x8000, scoped, tag = 'input window, operand 4, single buffered']
    #allocation12 [shape = 'u8[8192]{0}', space=vmem, size = 0x2000, scoped, tag = 'output window, operand 0']
    %11 = vsyncpa [#allocation5], 0
    %12 = vsyncpa [#allocation6], 0
    %13 = vsyncpa [#allocation3], 0
    %s14 = scalar_lea.sflag [#allocation3], 1
    %15 = vsyncpa %s14, 0
    %16 = vsyncpa [#allocation10], 0
    %s17 = scalar_lea.sflag [#allocation10], 1
    %18 = vsyncpa %s17, 0
    %19 = vsyncpa [#allocation4], 0
    %s20 = scalar_lea.sflag [#allocation4], 1
    %21 = vsyncpa %s20, 0
    loop: start=0, step=1, limit=4
    $region2: #{tpu_custom_call.1} parent=1 // loop_pre_header
      _
    $region3: #{tpu_custom_call.1} parent=1 // loop_header
      %s23 = sphi 0, %s27
      %p24 = scmp.ge.s32.totalorder %s23, 4
      %s30 = sphi 0, %s42
      %s31 = sphi 0, %s38
      %s32 = sphi 0, %s30
      %s33 = sphi 0, %s31
      %s34 = sphi 0, %s32
      %s35 = sphi 0, %s33
      %s43 = sphi 0, %s43
      %s45 = sphi 0, %s43
      %s46 = sphi 0, %s45
      %s60 = sphi 0, %s46
      %s64 = sphi 0, %s64
      %s66 = sphi 0, %s64
      %s67 = sphi 0, %s66
      %s81 = sphi 0, %s67
      %s89 = sphi 0, %s91
      %s92 = sphi 0, %s89
      %s93 = sphi 0, %s92
      %s109 = sphi 0, %s93
      %s117 = sphi 0, %s119
      %s120 = sphi 0, %s117
      %s121 = sphi 0, %s120
      %s137 = sphi 0, %s121
      %s141 = sphi 0, %s141
      %s143 = sphi 0, %s141
      %s144 = sphi 0, %s143
      %s158 = sphi 0, %s144
      %s162 = sphi 0, %s162
      %s164 = sphi 0, %s162
      %s165 = sphi 0, %s164
      %s179 = sphi 0, %s165
      %s187 = sphi 0, %s189
      %s190 = sphi 0, %s187
      %s191 = sphi 0, %s190
      %s207 = sphi 0, %s191
    $region4: #{tpu_custom_call.1} parent=1 // loop_header_branch
      %26 = sbr.rel (%p24) target = $region8
    $region5: #{tpu_custom_call.1} parent=1 // loop_body
      %s28 = ssub.s32 %s23, 1
      %s29 = ssub.s32 %s23, 2
      %s36 = sadd.s32 1, %s31
      %p37 = scmp.ge.s32.totalorder %s36, 1
      %s38 = scalar_select %p37, 0, %s36
      %s39 = sadd.s32 1, %s30
      %s40 = scalar_select %p37, %s39, %s30
      %p41 = scmp.ge.s32.totalorder %s40, 2
      %s42 = scalar_select %p41, 0, %s40
      %s44 = sadd.s32 %s43, 1
      %p47 = scmp.eq.s32.totalorder %s23, 1
      %p48 = scmp.ne.s32.totalorder %s43, %s45
      %p49 = scmp.eq.s32.totalorder %s23, 0
      %p50 = por %p48, %p49
      %p51 = scmp.ne.s32.totalorder %s43, %s45
      %p52 = scmp.eq.s32.totalorder %s28, 1
      %p53 = por %p51, %p52
      %p54 = scmp.ne.s32.totalorder %s45, %s46
      %p55 = scmp.eq.s32.totalorder %s28, 0
      %p56 = por %p54, %p55
      %p57 = scmp.ne.s32.totalorder %s45, %s46
      %p58 = scmp.eq.s32.totalorder %s29, 1
      %p59 = por %p57, %p58
      %p61 = scmp.ne.s32.totalorder %s46, %s60
      %p62 = scmp.eq.s32.totalorder %s29, 0
      %p63 = por %p61, %p62
      %s65 = sadd.s32 %s64, 1
      %p68 = scmp.eq.s32.totalorder %s23, 1
      %p69 = scmp.ne.s32.totalorder %s64, %s66
      %p70 = scmp.eq.s32.totalorder %s23, 0
      %p71 = por %p69, %p70
      %p72 = scmp.ne.s32.totalorder %s64, %s66
      %p73 = scmp.eq.s32.totalorder %s28, 1
      %p74 = por %p72, %p73
      %p75 = scmp.ne.s32.totalorder %s66, %s67
      %p76 = scmp.eq.s32.totalorder %s28, 0
      %p77 = por %p75, %p76
      %p78 = scmp.ne.s32.totalorder %s66, %s67
      %p79 = scmp.eq.s32.totalorder %s29, 1
      %p80 = por %p78, %p79
      %p82 = scmp.ne.s32.totalorder %s67, %s81
      %p83 = scmp.eq.s32.totalorder %s29, 0
      %p84 = por %p82, %p83
      %s85 = ssub.s32 %s30, %s42
      %s86 = ssub.s32 %s31, %s38
      %s87 = sor.u32 %s85, %s86
      %p88 = scmp.eq.s32.totalorder %s87, 0
      %s90 = sadd.s32 %s89, 1
      %s91 = scalar_select %p88, %s89, %s90
      %p94 = pneg %p88
      %p95 = scmp.eq.s32.totalorder %s23, 1
      %p96 = por %p94, %p95
      %p97 = scmp.ne.s32.totalorder %s89, %s92
      %p98 = scmp.eq.s32.totalorder %s23, 0
      %p99 = por %p97, %p98
      %p100 = scmp.ne.s32.totalorder %s89, %s92
      %p101 = scmp.eq.s32.totalorder %s28, 1
      %p102 = por %p100, %p101
      %p103 = scmp.ne.s32.totalorder %s92, %s93
      %p104 = scmp.eq.s32.totalorder %s28, 0
      %p105 = por %p103, %p104
      %p106 = scmp.ne.s32.totalorder %s92, %s93
      %p107 = scmp.eq.s32.totalorder %s29, 1
      %p108 = por %p106, %p107
      %p110 = scmp.ne.s32.totalorder %s93, %s109
      %p111 = scmp.eq.s32.totalorder %s29, 0
      %p112 = por %p110, %p111
      %s113 = ssub.s32 %s30, %s42
      %s114 = ssub.s32 %s31, %s38
      %s115 = sor.u32 %s113, %s114
      %p116 = scmp.eq.s32.totalorder %s115, 0
      %s118 = sadd.s32 %s117, 1
      %s119 = scalar_select %p116, %s117, %s118
      %p122 = pneg %p116
      %p123 = scmp.eq.s32.totalorder %s23, 1
      %p124 = por %p122, %p123
      %p125 = scmp.ne.s32.totalorder %s117, %s120
      %p126 = scmp.eq.s32.totalorder %s23, 0
      %p127 = por %p125, %p126
      %p128 = scmp.ne.s32.totalorder %s117, %s120
      %p129 = scmp.eq.s32.totalorder %s28, 1
      %p130 = por %p128, %p129
      %p131 = scmp.ne.s32.totalorder %s120, %s121
      %p132 = scmp.eq.s32.totalorder %s28, 0
      %p133 = por %p131, %p132
      %p134 = scmp.ne.s32.totalorder %s120, %s121
      %p135 = scmp.eq.s32.totalorder %s29, 1
      %p136 = por %p134, %p135
      %p138 = scmp.ne.s32.totalorder %s121, %s137
      %p139 = scmp.eq.s32.totalorder %s29, 0
      %p140 = por %p138, %p139
      %s142 = sadd.s32 %s141, 1
      %p145 = scmp.eq.s32.totalorder %s23, 1
      %p146 = scmp.ne.s32.totalorder %s141, %s143
      %p147 = scmp.eq.s32.totalorder %s23, 0
      %p148 = por %p146, %p147
      %p149 = scmp.ne.s32.totalorder %s141, %s143
      %p150 = scmp.eq.s32.totalorder %s28, 1
      %p151 = por %p149, %p150
      %p152 = scmp.ne.s32.totalorder %s143, %s144
      %p153 = scmp.eq.s32.totalorder %s28, 0
      %p154 = por %p152, %p153
      %p155 = scmp.ne.s32.totalorder %s143, %s144
      %p156 = scmp.eq.s32.totalorder %s29, 1
      %p157 = por %p155, %p156
      %p159 = scmp.ne.s32.totalorder %s144, %s158
      %p160 = scmp.eq.s32.totalorder %s29, 0
      %p161 = por %p159, %p160
      %s163 = sadd.s32 %s162, 1
      %p166 = scmp.eq.s32.totalorder %s23, 1
      %p167 = scmp.ne.s32.totalorder %s162, %s164
      %p168 = scmp.eq.s32.totalorder %s23, 0
      %p169 = por %p167, %p168
      %p170 = scmp.ne.s32.totalorder %s162, %s164
      %p171 = scmp.eq.s32.totalorder %s28, 1
      %p172 = por %p170, %p171
      %p173 = scmp.ne.s32.totalorder %s164, %s165
      %p174 = scmp.eq.s32.totalorder %s28, 0
      %p175 = por %p173, %p174
      %p176 = scmp.ne.s32.totalorder %s164, %s165
      %p177 = scmp.eq.s32.totalorder %s29, 1
      %p178 = por %p176, %p177
      %p180 = scmp.ne.s32.totalorder %s165, %s179
      %p181 = scmp.eq.s32.totalorder %s29, 0
      %p182 = por %p180, %p181
      %s183 = ssub.s32 %s30, %s42
      %s184 = ssub.s32 %s31, %s38
      %s185 = sor.u32 %s183, %s184
      %p186 = scmp.eq.s32.totalorder %s185, 0
      %s188 = sadd.s32 %s187, 1
      %s189 = scalar_select %p186, %s187, %s188
      %p192 = pneg %p186
      %p193 = scmp.eq.s32.totalorder %s23, 1
      %p194 = por %p192, %p193
      %p195 = scmp.ne.s32.totalorder %s187, %s190
      %p196 = scmp.eq.s32.totalorder %s23, 0
      %p197 = por %p195, %p196
      %p198 = scmp.ne.s32.totalorder %s187, %s190
      %p199 = scmp.eq.s32.totalorder %s28, 1
      %p200 = por %p198, %p199
      %p201 = scmp.ne.s32.totalorder %s190, %s191
      %p202 = scmp.eq.s32.totalorder %s28, 0
      %p203 = por %p201, %p202
      %p204 = scmp.ne.s32.totalorder %s190, %s191
      %p205 = scmp.eq.s32.totalorder %s29, 1
      %p206 = por %p204, %p205
      %p208 = scmp.ne.s32.totalorder %s191, %s207
      %p209 = scmp.eq.s32.totalorder %s29, 0
      %p210 = por %p208, %p209
      %p211 = scmp.le.s32.totalorder 1, %s23
      %p212 = scmp.lt.s32.totalorder %s23, 3
      %p213 = pnand %p211, %p212
      %p214 = pneg %p213
      // Predicated region
      $region9: #{tpu_custom_call.1} parent=5 // pred_check
        _
      $region10: #{tpu_custom_call.1} parent=5 // pred_check_branch
        %216 = sbr.rel (%p213) target = $region12
      $region11: #{tpu_custom_call.1} parent=5 // pred_region
        %s217 = ssub.s32 %s23, 1
        // Predicated region
        $region13: #{tpu_custom_call.1} parent=11 // pred_check
          %p218 = pneg %p56
        $region14: #{tpu_custom_call.1} parent=11 // pred_check_branch
          %220 = sbr.rel (%p218) target = $region16
        $region15: #{tpu_custom_call.1} parent=11 // pred_region
          %s222 = ssub.s32 16, 16
          %223 = vsyncadd [#allocation5], %s222
          %226 = dma.hbm_to_smem %s0, 16, [#allocation2], [#allocation5]
        $region16: #{tpu_custom_call.1} parent=11 // pred_fallthru
          _
        // Predicated region
        $region17: #{tpu_custom_call.1} parent=11 // pred_check
          %p227 = pneg %p77
        $region18: #{tpu_custom_call.1} parent=11 // pred_check_branch
          %229 = sbr.rel (%p227) target = $region20
        $region19: #{tpu_custom_call.1} parent=11 // pred_region
          %s231 = ssub.s32 16, 16
          %232 = vsyncadd [#allocation6], %s231
          %s234 = sshll.u32 %s1, 4
          %s235 = int_to_ptr.vmem [resolvable:$true] %s234
          %237 = dma.vmem_to_smem %s235, 16, [#allocation7], [#allocation6]
        $region20: #{tpu_custom_call.1} parent=11 // pred_fallthru
          _
        // Predicated region
        $region21: #{tpu_custom_call.1} parent=11 // pred_check
          %p238 = pneg %p154
        $region22: #{tpu_custom_call.1} parent=11 // pred_check_branch
          %240 = sbr.rel (%p238) target = $region24
        $region23: #{tpu_custom_call.1} parent=11 // pred_region
          %s242 = ssub.s32 1024, 1024
          %243 = vsyncadd [#allocation10], %s242
          %s244 = sshll.u32 [#allocation11], 4
          %s245 = int_to_ptr.vmem [resolvable:$true] %s244
          %250 = dma.hbm_to_vmem [thread:$0]  %s4, 1024, %s245, [#allocation10], 64, 64, 4
        $region24: #{tpu_custom_call.1} parent=11 // pred_fallthru
          _
        // Predicated region
        $region25: #{tpu_custom_call.1} parent=11 // pred_check
          %p251 = pneg %p175
        $region26: #{tpu_custom_call.1} parent=11 // pred_check_branch
          %253 = sbr.rel (%p251) target = $region28
        $region27: #{tpu_custom_call.1} parent=11 // pred_region
          _
        $region28: #{tpu_custom_call.1} parent=11 // pred_fallthru
          _
      $region12: #{tpu_custom_call.1} parent=5 // pred_fallthru
        _
      %p254 = scmp.lt.s32.totalorder %s23, 2
      // Predicated region
      $region29: #{tpu_custom_call.1} parent=5 // pred_check
        %p255 = pneg %p254
      $region30: #{tpu_custom_call.1} parent=5 // pred_check_branch
        %257 = sbr.rel (%p255) target = $region32
      $region31: #{tpu_custom_call.1} parent=5 // pred_region
        // Predicated region
        $region33: #{tpu_custom_call.1} parent=31 // pred_check
          %p258 = pneg %p99
        $region34: #{tpu_custom_call.1} parent=31 // pred_check_branch
          %260 = sbr.rel (%p258) target = $region36
        $region35: #{tpu_custom_call.1} parent=31 // pred_region
          %s261 = sand.u32 %s89, 1
          %s262 = scalar_lea.sflag [#allocation3], %s261
          %s263 = sand.u32 %s89, 1
          %s264 = smul.addr %s263, 32
          %s265 = scalar_lea.vmem [#allocation8], %s264
          %s266 = smul.u32 8, %s31
          %s268 = ssub.s32 512, 512
          %269 = vsyncadd %s262, %s268
          %s270 = smul.addr %s30, 8
          %s271 = sadd.s32 %s266, %s270
          %s272 = smul.addr %s271, 64
          %s273 = scalar_lea.hbm %s2, %s272
          %s274 = sshll.u32 %s265, 4
          %s275 = int_to_ptr.vmem [resolvable:$true] %s274
          %280 = dma.hbm_to_vmem [thread:$0]  %s273, 512, %s275, %s262, 64, 64, 4
        $region36: #{tpu_custom_call.1} parent=31 // pred_fallthru
          _
        // Predicated region
        $region37: #{tpu_custom_call.1} parent=31 // pred_check
          %p281 = pneg %p127
        $region38: #{tpu_custom_call.1} parent=31 // pred_check_branch
          %283 = sbr.rel (%p281) target = $region40
        $region39: #{tpu_custom_call.1} parent=31 // pred_region
          %s284 = sand.u32 %s23, 1
          %s285 = scalar_lea.sflag [#allocation10], %s284
          %s286 = sand.u32 %s117, 1
          %s287 = smul.addr %s286, 8
          %s288 = scalar_lea.vmem [#allocation9], %s287
          %s290 = ssub.s32 128, 128
          %291 = vsyncadd %s285, %s290
          %s292 = sadd.s32 %s31, %s30
          %s293 = smul.addr %s292, 128
          %s294 = scalar_lea.hbm %s3, %s293
          %s296 = sshll.u32 %s288, 4
          %s297 = int_to_ptr.vmem [resolvable:$true] %s296
          %299 = dma.hbm_to_vmem [thread:$0]  %s294, 128, %s297, %s285
        $region40: #{tpu_custom_call.1} parent=31 // pred_fallthru
          _
      $region32: #{tpu_custom_call.1} parent=5 // pred_fallthru
        _
      %p300 = scmp.le.s32.totalorder 1, %s23
      %p301 = scmp.lt.s32.totalorder %s23, 3
      %p302 = pnand %p300, %p301
      %p303 = pneg %p302
      // Predicated region
      $region41: #{tpu_custom_call.1} parent=5 // pred_check
        _
      $region42: #{tpu_custom_call.1} parent=5 // pred_check_branch
        %305 = sbr.rel (%p302) target = $region44
      $region43: #{tpu_custom_call.1} parent=5 // pred_region
        %s306 = ssub.s32 %s23, 1
        // Predicated region
        $region45: #{tpu_custom_call.1} parent=43 // pred_check
          %p307 = pneg %p56
        $region46: #{tpu_custom_call.1} parent=43 // pred_check_branch
          %309 = sbr.rel (%p307) target = $region48
        $region47: #{tpu_custom_call.1} parent=43 // pred_region
          %310 = dma.done [#allocation5], 16
        $region48: #{tpu_custom_call.1} parent=43 // pred_fallthru
          _
        // Predicated region
        $region49: #{tpu_custom_call.1} parent=43 // pred_check
          %p311 = pneg %p77
        $region50: #{tpu_custom_call.1} parent=43 // pred_check_branch
          %313 = sbr.rel (%p311) target = $region52
        $region51: #{tpu_custom_call.1} parent=43 // pred_region
          %314 = dma.done [#allocation6], 16
        $region52: #{tpu_custom_call.1} parent=43 // pred_fallthru
          _
        %s315 = sand.u32 %s92, 1
        %s316 = scalar_lea.sflag [#allocation3], %s315
        %s317 = sand.u32 %s92, 1
        %s318 = smul.addr %s317, 32
        %s319 = scalar_lea.vmem [#allocation8], %s318
        // Predicated region
        $region53: #{tpu_custom_call.1} parent=43 // pred_check
          %p320 = pneg %p105
        $region54: #{tpu_custom_call.1} parent=43 // pred_check_branch
          %322 = sbr.rel (%p320) target = $region56
        $region55: #{tpu_custom_call.1} parent=43 // pred_region
          %323 = dma.done %s316, 512
        $region56: #{tpu_custom_call.1} parent=43 // pred_fallthru
          _
        %s324 = sand.u32 %s28, 1
        %s325 = scalar_lea.sflag [#allocation10], %s324
        %s326 = sand.u32 %s120, 1
        %s327 = smul.addr %s326, 8
        %s328 = scalar_lea.vmem [#allocation9], %s327
        // Predicated region
        $region57: #{tpu_custom_call.1} parent=43 // pred_check
          %p329 = pneg %p133
        $region58: #{tpu_custom_call.1} parent=43 // pred_check_branch
          %331 = sbr.rel (%p329) target = $region60
        $region59: #{tpu_custom_call.1} parent=43 // pred_region
          %332 = dma.done %s325, 128
        $region60: #{tpu_custom_call.1} parent=43 // pred_fallthru
          _
        // Predicated region
        $region61: #{tpu_custom_call.1} parent=43 // pred_check
          %p333 = pneg %p154
        $region62: #{tpu_custom_call.1} parent=43 // pred_check_branch
          %335 = sbr.rel (%p333) target = $region64
        $region63: #{tpu_custom_call.1} parent=43 // pred_region
          %336 = dma.done [#allocation10], 1024
        $region64: #{tpu_custom_call.1} parent=43 // pred_fallthru
          _
        %337 = sfence
        %p338 = pneg %p56
        %p339 = pneg %p53
        %p340 = pneg %p77
        %p341 = pneg %p74
        %s342 = sand.u32 %s92, 1
        %s343 = scalar_lea.sflag [#allocation3], %s342
        %s344 = sand.u32 %s92, 1
        %s345 = smul.addr %s344, 32
        %s346 = scalar_lea.vmem [#allocation8], %s345
        %p347 = pneg %p105
        %p348 = pneg %p102
        %s349 = sand.u32 %s28, 1
        %s350 = scalar_lea.sflag [#allocation10], %s349
        %s351 = sand.u32 %s120, 1
        %s352 = smul.addr %s351, 8
        %s353 = scalar_lea.vmem [#allocation9], %s352
        %p354 = pneg %p133
        %p355 = pneg %p130
        %p356 = pneg %p154
        %p357 = pneg %p151
        %p358 = pneg %p175
        %p359 = pneg %p172
        %p360 = pneg %p203
        %p361 = pneg %p200
        %s362 = sand.u32 %s190, 1
        %s363 = scalar_lea.sflag [#allocation4], %s362
        %s364 = sand.u32 %s190, 1
        %s365 = smul.addr %s364, 8
        %s366 = scalar_lea.vmem [#allocation12], %s365
        %s367 = smul.u32 8, %s33
        %v369 = vld [vmem:[%s319] sm:$0xf]
        %v370 = vld [vmem:[%s319 + $0x4] sm:$0xf]
        %v371 = vld [vmem:[%s319 + $0x8] sm:$0xf]
        %v372 = vld [vmem:[%s319 + $0xc] sm:$0xf]
        %v373 = vld [vmem:[%s319 + $0x10] sm:$0xf]
        %v374 = vld [vmem:[%s319 + $0x14] sm:$0xf]
        %v375 = vld [vmem:[%s319 + $0x18] sm:$0xf]
        %v376 = vld [vmem:[%s319 + $0x1c] sm:$0xf]
        %v377 = vld [vmem:[#allocation11] sm:$0xf]
        %v378 = vld [vmem:[#allocation11 + $0x4] sm:$0xf]
        %v379 = vld [vmem:[#allocation11 + $0x8] sm:$0xf]
        %v380 = vld [vmem:[#allocation11 + $0xc] sm:$0xf]
        %v381 = vld [vmem:[#allocation11 + $0x10] sm:$0xf]
        %v382 = vld [vmem:[#allocation11 + $0x14] sm:$0xf]
        %v383 = vld [vmem:[#allocation11 + $0x18] sm:$0xf]
        %v384 = vld [vmem:[#allocation11 + $0x1c] sm:$0xf]
        %v385 = vld [vmem:[#allocation11 + $0x20] sm:$0xf]
        %v386 = vld [vmem:[#allocation11 + $0x24] sm:$0xf]
        %v387 = vld [vmem:[#allocation11 + $0x28] sm:$0xf]
        %v388 = vld [vmem:[#allocation11 + $0x2c] sm:$0xf]
        %v389 = vld [vmem:[#allocation11 + $0x30] sm:$0xf]
        %v390 = vld [vmem:[#allocation11 + $0x34] sm:$0xf]
        %v391 = vld [vmem:[#allocation11 + $0x38] sm:$0xf]
        %v392 = vld [vmem:[#allocation11 + $0x3c] sm:$0xf]
        %v393 = vld [vmem:[%s5] sm:$0x1]
        %v395 = vlaneseq
        %v396 = vshrl.u32 %v395, 7
        %v397 = vsub.s32 0, %v396
        %v398 = vrot.slane %v393, %v397
        %v408 = vunpack.c.l.b16 %v369
        %v409 = vunpack.c.l.b16 %v370
        %v410 = vunpack.c.l.b16 %v371
        %v411 = vunpack.c.l.b16 %v372
        %v412 = vunpack.c.l.b16 %v373
        %v413 = vunpack.c.l.b16 %v374
        %v414 = vunpack.c.l.b16 %v375
        %v415 = vunpack.c.l.b16 %v376
        %v416 = vpack.c.b16 %v409, %v408
        %v417 = vpack.c.b16 %v411, %v410
        %v418 = vpack.c.b16 %v413, %v412
        %v419 = vpack.c.b16 %v415, %v414
        %v440 = vunpack.c.l.b16 %v377
        %v441 = vunpack.c.l.b16 %v378
        %v442 = vunpack.c.l.b16 %v379
        %v443 = vunpack.c.l.b16 %v380
        %v444 = vunpack.c.l.b16 %v381
        %v445 = vunpack.c.l.b16 %v382
        %v446 = vunpack.c.l.b16 %v383
        %v447 = vunpack.c.l.b16 %v384
        %v448 = vunpack.c.l.b16 %v385
        %v449 = vunpack.c.l.b16 %v386
        %v450 = vunpack.c.l.b16 %v387
        %v451 = vunpack.c.l.b16 %v388
        %v452 = vunpack.c.l.b16 %v389
        %v453 = vunpack.c.l.b16 %v390
        %v454 = vunpack.c.l.b16 %v391
        %v455 = vunpack.c.l.b16 %v392
        %v456 = vpack.c.b16 %v441, %v440
        %v457 = vpack.c.b16 %v443, %v442
        %v458 = vpack.c.b16 %v445, %v444
        %v459 = vpack.c.b16 %v447, %v446
        %v460 = vpack.c.b16 %v449, %v448
        %v461 = vpack.c.b16 %v451, %v450
        %v462 = vpack.c.b16 %v453, %v452
        %v463 = vpack.c.b16 %v455, %v454
        %472 = vmatprep.subr.bf16.mxu0 0
        %473 = vmatpush1.bf16.msra.mxu0 %v456
        %474 = vmatprep.subr.bf16.mxu0 0
        %475 = vmatpush1.bf16.msra.mxu0 %v457
        %476 = vmatprep.subr.bf16.mxu0 0
        %477 = vmatpush1.bf16.msra.mxu0 %v458
        %478 = vmatprep.subr.bf16.mxu0 0
        %479 = vmatpush1.bf16.msra.mxu0 %v459
        %480 = vmatprep.subr.bf16.mxu0 0
        %481 = vmatpush1.bf16.msra.mxu0 %v460
        %482 = vmatprep.subr.bf16.mxu0 0
        %483 = vmatpush1.bf16.msra.mxu0 %v461
        %484 = vmatprep.subr.bf16.mxu0 0
        %485 = vmatpush1.bf16.msra.mxu0 %v462
        %486 = vmatprep.subr.bf16.mxu0 0
        %487 = vmatpush1.bf16.msra.mxu0 %v463
        %488 = vmatprep.subr.bf16.mxu0 0
        %489 = vmatpush1.bf16.msra.mxu0 0
        %490 = vmatprep.subr.bf16.mxu0 0
        %491 = vmatpush1.bf16.msra.mxu0 0
        %492 = vmatprep.subr.bf16.mxu0 0
        %493 = vmatpush1.bf16.msra.mxu0 0
        %494 = vmatprep.subr.bf16.mxu0 0
        %495 = vmatpush1.bf16.msra.mxu0 0
        %496 = vmatprep.subr.bf16.mxu0 0
        %497 = vmatpush1.bf16.msra.mxu0 0
        %498 = vmatprep.subr.bf16.mxu0 0
        %499 = vmatpush1.bf16.msra.mxu0 0
        %500 = vmatprep.subr.bf16.mxu0 0
        %501 = vmatpush1.bf16.msra.mxu0 0
        %502 = vmatprep.subr.bf16.mxu0 0
        %503 = vmatpush1.bf16.msra.mxu0 0
        %504 = vmatprep.mubr.bf16.mxu0 0
        %505 = vmatmul.mubr.bf16.gmra.mrb[0].mxu0 %v416
        %v506 = vpop.f32.mrb[0].mxu0
        %v507 = vadd.f32 %v398, %v506
        %v508 = vpop.f32.mrb[0].mxu0
        %v509 = vpop.f32.mrb[0].mxu0
        %v510 = vadd.f32 %v398, %v509
        %v511 = vpop.f32.mrb[0].mxu0
        %512 = vmatprep.mubr.bf16.mxu0 0
        %513 = vmatmul.mubr.bf16.gmra.mrb[0].mxu0 %v417
        %v514 = vpop.f32.mrb[0].mxu0
        %v515 = vadd.f32 %v398, %v514
        %v516 = vpop.f32.mrb[0].mxu0
        %v517 = vpop.f32.mrb[0].mxu0
        %v518 = vadd.f32 %v398, %v517
        %v519 = vpop.f32.mrb[0].mxu0
        %520 = vmatprep.mubr.bf16.mxu0 0
        %521 = vmatmul.mubr.bf16.gmra.mrb[0].mxu0 %v418
        %v522 = vpop.f32.mrb[0].mxu0
        %v523 = vadd.f32 %v398, %v522
        %v524 = vpop.f32.mrb[0].mxu0
        %v525 = vpop.f32.mrb[0].mxu0
        %v526 = vadd.f32 %v398, %v525
        %v527 = vpop.f32.mrb[0].mxu0
        %528 = vmatprep.mubr.bf16.mxu0 0
        %529 = vmatmul.mubr.bf16.gmra.mrb[0].mxu0 %v419
        %v530 = vpop.f32.mrb[0].mxu0
        %v531 = vadd.f32 %v398, %v530
        %v532 = vpop.f32.mrb[0].mxu0
        %v533 = vpop.f32.mrb[0].mxu0
        %v534 = vadd.f32 %v398, %v533
        %v535 = vpop.f32.mrb[0].mxu0
        %536 = vdwg.mxu0
        %v537 = vtanh.pop %v507
        %v538 = vtanh.pop %v510
        %v539 = vtanh.pop %v515
        %v540 = vtanh.pop %v518
        %v541 = vtanh.pop %v523
        %v542 = vtanh.pop %v526
        %v543 = vtanh.pop %v531
        %v544 = vtanh.pop %v534
        %s545 = sld [smem:[#allocation7 + %s32]]
        %s546 = sld [smem:[#allocation2 + %s32]]
        %s547 = sadd.s32 %s33, 1
        %s548 = smul.u32 %s547, 2654435769
        %s549 = sadd.s32 %s546, %s548
        %v550 = vlaneseq
        %v551 = vshrl.u32 %v550, 7
        %v552 = vadd.s32 %v551, 8
        %v553 = vadd.s32 %v551, 16
        %v554 = vadd.s32 %v551, 24
        %v555 = vadd.s32 %v551, 32
        %v556 = vadd.s32 %v551, 40
        %v557 = vadd.s32 %v551, 48
        %v558 = vadd.s32 %v551, 56
        %v559 = vlaneseq
        %v560 = vand.u32 %v559, 127
        %v561 = vmul.u32 %v551, 2246822507
        %v562 = vmul.u32 %v552, 2246822507
        %v563 = vmul.u32 %v553, 2246822507
        %v564 = vmul.u32 %v554, 2246822507
        %v565 = vmul.u32 %v555, 2246822507
        %v566 = vmul.u32 %v556, 2246822507
        %v567 = vmul.u32 %v557, 2246822507
        %v568 = vmul.u32 %v558, 2246822507
        %v569 = vmul.u32 %v560, 3266489909
        %v570 = vxor.u32 %v561, %v569
        %v571 = vxor.u32 %v562, %v569
        %v572 = vxor.u32 %v563, %v569
        %v573 = vxor.u32 %v564, %v569
        %v574 = vxor.u32 %v565, %v569
        %v575 = vxor.u32 %v566, %v569
        %v576 = vxor.u32 %v567, %v569
        %v577 = vxor.u32 %v568, %v569
        %v578 = vstv %s549
        %v579 = vxor.u32 %v570, %v578
        %v580 = vxor.u32 %v571, %v578
        %v581 = vxor.u32 %v572, %v578
        %v582 = vxor.u32 %v573, %v578
        %v583 = vxor.u32 %v574, %v578
        %v584 = vxor.u32 %v575, %v578
        %v585 = vxor.u32 %v576, %v578
        %v586 = vxor.u32 %v577, %v578
        %v587 = vshrl.u32 %v579, 16
        %v588 = vshrl.u32 %v580, 16
        %v589 = vshrl.u32 %v581, 16
        %v590 = vshrl.u32 %v582, 16
        %v591 = vshrl.u32 %v583, 16
        %v592 = vshrl.u32 %v584, 16
        %v593 = vshrl.u32 %v585, 16
        %v594 = vshrl.u32 %v586, 16
        %v595 = vxor.u32 %v579, %v587
        %v596 = vxor.u32 %v580, %v588
        %v597 = vxor.u32 %v581, %v589
        %v598 = vxor.u32 %v582, %v590
        %v599 = vxor.u32 %v583, %v591
        %v600 = vxor.u32 %v584, %v592
        %v601 = vxor.u32 %v585, %v593
        %v602 = vxor.u32 %v586, %v594
        %v603 = vmul.u32 %v595, 2146121005
        %v604 = vmul.u32 %v596, 2146121005
        %v605 = vmul.u32 %v597, 2146121005
        %v606 = vmul.u32 %v598, 2146121005
        %v607 = vmul.u32 %v599, 2146121005
        %v608 = vmul.u32 %v600, 2146121005
        %v609 = vmul.u32 %v601, 2146121005
        %v610 = vmul.u32 %v602, 2146121005
        %v611 = vshrl.u32 %v603, 15
        %v612 = vshrl.u32 %v604, 15
        %v613 = vshrl.u32 %v605, 15
        %v614 = vshrl.u32 %v606, 15
        %v615 = vshrl.u32 %v607, 15
        %v616 = vshrl.u32 %v608, 15
        %v617 = vshrl.u32 %v609, 15
        %v618 = vshrl.u32 %v610, 15
        %v619 = vxor.u32 %v603, %v611
        %v620 = vxor.u32 %v604, %v612
        %v621 = vxor.u32 %v605, %v613
        %v622 = vxor.u32 %v606, %v614
        %v623 = vxor.u32 %v607, %v615
        %v624 = vxor.u32 %v608, %v616
        %v625 = vxor.u32 %v609, %v617
        %v626 = vxor.u32 %v610, %v618
        %v627 = vmul.u32 %v619, 2221713035
        %v628 = vmul.u32 %v620, 2221713035
        %v629 = vmul.u32 %v621, 2221713035
        %v630 = vmul.u32 %v622, 2221713035
        %v631 = vmul.u32 %v623, 2221713035
        %v632 = vmul.u32 %v624, 2221713035
        %v633 = vmul.u32 %v625, 2221713035
        %v634 = vmul.u32 %v626, 2221713035
        %v635 = vshrl.u32 %v627, 16
        %v636 = vshrl.u32 %v628, 16
        %v637 = vshrl.u32 %v629, 16
        %v638 = vshrl.u32 %v630, 16
        %v639 = vshrl.u32 %v631, 16
        %v640 = vshrl.u32 %v632, 16
        %v641 = vshrl.u32 %v633, 16
        %v642 = vshrl.u32 %v634, 16
        %v643 = vxor.u32 %v627, %v635
        %v644 = vxor.u32 %v628, %v636
        %v645 = vxor.u32 %v629, %v637
        %v646 = vxor.u32 %v630, %v638
        %v647 = vxor.u32 %v631, %v639
        %v648 = vxor.u32 %v632, %v640
        %v649 = vxor.u32 %v633, %v641
        %v650 = vxor.u32 %v634, %v642
        %v651 = vshrl.u32 %v643, 8
        %v652 = vshrl.u32 %v644, 8
        %v653 = vshrl.u32 %v645, 8
        %v654 = vshrl.u32 %v646, 8
        %v655 = vshrl.u32 %v647, 8
        %v656 = vshrl.u32 %v648, 8
        %v657 = vshrl.u32 %v649, 8
        %v658 = vshrl.u32 %v650, 8
        %v659 = vshrl.u32 %v651, 16
        %v660 = vand.u32 %v651, 65535
        %v661 = vcvt.s32.f32 %v659
        %v662 = vmul.f32 %v661, 65536.0
        %v663 = vcvt.s32.f32 %v660
        %v664 = vadd.f32 %v662, %v663
        %v665 = vshrl.u32 %v652, 16
        %v666 = vand.u32 %v652, 65535
        %v667 = vcvt.s32.f32 %v665
        %v668 = vmul.f32 %v667, 65536.0
        %v669 = vcvt.s32.f32 %v666
        %v670 = vadd.f32 %v668, %v669
        %v671 = vshrl.u32 %v653, 16
        %v672 = vand.u32 %v653, 65535
        %v673 = vcvt.s32.f32 %v671
        %v674 = vmul.f32 %v673, 65536.0
        %v675 = vcvt.s32.f32 %v672
        %v676 = vadd.f32 %v674, %v675
        %v677 = vshrl.u32 %v654, 16
        %v678 = vand.u32 %v654, 65535
        %v679 = vcvt.s32.f32 %v677
        %v680 = vmul.f32 %v679, 65536.0
        %v681 = vcvt.s32.f32 %v678
        %v682 = vadd.f32 %v680, %v681
        %v683 = vshrl.u32 %v655, 16
        %v684 = vand.u32 %v655, 65535
        %v685 = vcvt.s32.f32 %v683
        %v686 = vmul.f32 %v685, 65536.0
        %v687 = vcvt.s32.f32 %v684
        %v688 = vadd.f32 %v686, %v687
        %v689 = vshrl.u32 %v656, 16
        %v690 = vand.u32 %v656, 65535
        %v691 = vcvt.s32.f32 %v689
        %v692 = vmul.f32 %v691, 65536.0
        %v693 = vcvt.s32.f32 %v690
        %v694 = vadd.f32 %v692, %v693
        %v695 = vshrl.u32 %v657, 16
        %v696 = vand.u32 %v657, 65535
        %v697 = vcvt.s32.f32 %v695
        %v698 = vmul.f32 %v697, 65536.0
        %v699 = vcvt.s32.f32 %v696
        %v700 = vadd.f32 %v698, %v699
        %v701 = vshrl.u32 %v658, 16
        %v702 = vand.u32 %v658, 65535
        %v703 = vcvt.s32.f32 %v701
        %v704 = vmul.f32 %v703, 65536.0
        %v705 = vcvt.s32.f32 %v702
        %v706 = vadd.f32 %v704, %v705
        %v707 = vmul.f32 %v664, 5.9604645e-08
        %v708 = vmul.f32 %v670, 5.9604645e-08
        %v709 = vmul.f32 %v676, 5.9604645e-08
        %v710 = vmul.f32 %v682, 5.9604645e-08
        %v711 = vmul.f32 %v688, 5.9604645e-08
        %v712 = vmul.f32 %v694, 5.9604645e-08
        %v713 = vmul.f32 %v700, 5.9604645e-08
        %v714 = vmul.f32 %v706, 5.9604645e-08
        %s715 = ssub.f32 1.0, %s545
        %v716 = vstv %s715
        %v717 = vrcp.pop %v716
        %s718 = vtos %v717
        %v719 = vstv %s545
        %vm720 = vcmp.ge.f32.partialorder %v707, %v719
        %vm721 = vcmp.ge.f32.partialorder %v708, %v719
        %vm722 = vcmp.ge.f32.partialorder %v709, %v719
        %vm723 = vcmp.ge.f32.partialorder %v710, %v719
        %vm724 = vcmp.ge.f32.partialorder %v711, %v719
        %vm725 = vcmp.ge.f32.partialorder %v712, %v719
        %vm726 = vcmp.ge.f32.partialorder %v713, %v719
        %vm727 = vcmp.ge.f32.partialorder %v714, %v719
        %v728 = vstv %s718
        %v729 = vmul.f32 %v537, %v728
        %v730 = vmul.f32 %v538, %v728
        %v731 = vmul.f32 %v539, %v728
        %v732 = vmul.f32 %v540, %v728
        %v733 = vmul.f32 %v541, %v728
        %v734 = vmul.f32 %v542, %v728
        %v735 = vmul.f32 %v543, %v728
        %v736 = vmul.f32 %v544, %v728
        %v737 = vsel %vm720, %v729, 0.0
        %v738 = vsel %vm721, %v730, 0.0
        %v739 = vsel %vm722, %v731, 0.0
        %v740 = vsel %vm723, %v732, 0.0
        %v741 = vsel %vm724, %v733, 0.0
        %v742 = vsel %vm725, %v734, 0.0
        %v743 = vsel %vm726, %v735, 0.0
        %v744 = vsel %vm727, %v736, 0.0
        %v745 = vld [vmem:[%s328] sm:$0xff]
        %v746 = vlaneseq
        %v747 = vshrl.u32 %v746, 7
        %v748 = vsub.s32 0, %v747
        %v749 = vrot.slane %v745, %v748
        %751 = vbcast.lane.b32.xlu0 %v749, 256
        %v752 = vpop.permute.xlu0 %751
        %v753 = vlaneseq
        %v754 = vshrl.u32 %v753, 7
        %v755 = vsub.s32 1, %v754
        %v756 = vrot.slane %v745, %v755
        %758 = vbcast.lane.b32.xlu0 %v756, 256
        %v759 = vpop.permute.xlu0 %758
        %v760 = vlaneseq
        %v761 = vshrl.u32 %v760, 7
        %v762 = vsub.s32 2, %v761
        %v763 = vrot.slane %v745, %v762
        %765 = vbcast.lane.b32.xlu0 %v763, 256
        %v766 = vpop.permute.xlu0 %765
        %v767 = vlaneseq
        %v768 = vshrl.u32 %v767, 7
        %v769 = vsub.s32 3, %v768
        %v770 = vrot.slane %v745, %v769
        %772 = vbcast.lane.b32.xlu0 %v770, 256
        %v773 = vpop.permute.xlu0 %772
        %v774 = vlaneseq
        %v775 = vshrl.u32 %v774, 7
        %v776 = vsub.s32 4, %v775
        %v777 = vrot.slane %v745, %v776
        %779 = vbcast.lane.b32.xlu0 %v777, 256
        %v780 = vpop.permute.xlu0 %779
        %v781 = vlaneseq
        %v782 = vshrl.u32 %v781, 7
        %v783 = vsub.s32 5, %v782
        %v784 = vrot.slane %v745, %v783
        %786 = vbcast.lane.b32.xlu0 %v784, 256
        %v787 = vpop.permute.xlu0 %786
        %v788 = vlaneseq
        %v789 = vshrl.u32 %v788, 7
        %v790 = vsub.s32 6, %v789
        %v791 = vrot.slane %v745, %v790
        %793 = vbcast.lane.b32.xlu0 %v791, 256
        %v794 = vpop.permute.xlu0 %793
        %v795 = vlaneseq
        %v796 = vshrl.u32 %v795, 7
        %v797 = vsub.s32 7, %v796
        %v798 = vrot.slane %v745, %v797
        %800 = vbcast.lane.b32.xlu0 %v798, 256
        %v801 = vpop.permute.xlu0 %800
        %v802 = vmul.f32 %v737, %v752
        %v803 = vmul.f32 %v738, %v759
        %v804 = vmul.f32 %v739, %v766
        %v805 = vmul.f32 %v740, %v773
        %v806 = vmul.f32 %v741, %v780
        %v807 = vmul.f32 %v742, %v787
        %v808 = vmul.f32 %v743, %v794
        %v809 = vmul.f32 %v744, %v801
        %v810 = vrot.slane %v802, 4
        %v811 = vadd.f32 %v802, %v810
        %v812 = vrot.slane %v811, 2
        %v813 = vadd.f32 %v811, %v812
        %v814 = vrot.slane %v813, 1
        %v815 = vadd.f32 %v813, %v814
        %v816 = vrot.slane %v803, 4
        %v817 = vadd.f32 %v803, %v816
        %v818 = vrot.slane %v817, 2
        %v819 = vadd.f32 %v817, %v818
        %v820 = vrot.slane %v819, 1
        %v821 = vadd.f32 %v819, %v820
        %v822 = vrot.slane %v804, 4
        %v823 = vadd.f32 %v804, %v822
        %v824 = vrot.slane %v823, 2
        %v825 = vadd.f32 %v823, %v824
        %v826 = vrot.slane %v825, 1
        %v827 = vadd.f32 %v825, %v826
        %v828 = vrot.slane %v805, 4
        %v829 = vadd.f32 %v805, %v828
        %v830 = vrot.slane %v829, 2
        %v831 = vadd.f32 %v829, %v830
        %v832 = vrot.slane %v831, 1
        %v833 = vadd.f32 %v831, %v832
        %v834 = vrot.slane %v806, 4
        %v835 = vadd.f32 %v806, %v834
        %v836 = vrot.slane %v835, 2
        %v837 = vadd.f32 %v835, %v836
        %v838 = vrot.slane %v837, 1
        %v839 = vadd.f32 %v837, %v838
        %v840 = vrot.slane %v807, 4
        %v841 = vadd.f32 %v807, %v840
        %v842 = vrot.slane %v841, 2
        %v843 = vadd.f32 %v841, %v842
        %v844 = vrot.slane %v843, 1
        %v845 = vadd.f32 %v843, %v844
        %v846 = vrot.slane %v808, 4
        %v847 = vadd.f32 %v808, %v846
        %v848 = vrot.slane %v847, 2
        %v849 = vadd.f32 %v847, %v848
        %v850 = vrot.slane %v849, 1
        %v851 = vadd.f32 %v849, %v850
        %v852 = vrot.slane %v809, 4
        %v853 = vadd.f32 %v809, %v852
        %v854 = vrot.slane %v853, 2
        %v855 = vadd.f32 %v853, %v854
        %v856 = vrot.slane %v855, 1
        %v857 = vadd.f32 %v855, %v856
        %vm858 = vcmask 64512
        %v859 = vsel %vm858, %v745, 0.0
        %860 = vadd.xlane.f32.xlu0 %v859
        %v861 = vpop.xlane.xlu0 %860
        %v862 = vmax.f32 %v861, 1.0
        %v864 = vrot.slane %v862, 1
        %v865 = vrot.slane %v862, 2
        %v866 = vrot.slane %v862, 3
        %v867 = vrot.slane %v862, 4
        %v868 = vrot.slane %v862, 5
        %v869 = vrot.slane %v862, 6
        %v870 = vrot.slane %v862, 7
        %v879 = vrcp.pop %v862
        %v880 = vmul.f32 %v815, %v879
        %v881 = vrcp.pop %v864
        %v882 = vmul.f32 %v821, %v881
        %v883 = vrcp.pop %v865
        %v884 = vmul.f32 %v827, %v883
        %v885 = vrcp.pop %v866
        %v886 = vmul.f32 %v833, %v885
        %v887 = vrcp.pop %v867
        %v888 = vmul.f32 %v839, %v887
        %v889 = vrcp.pop %v868
        %v890 = vmul.f32 %v845, %v889
        %v891 = vrcp.pop %v869
        %v892 = vmul.f32 %v851, %v891
        %v893 = vrcp.pop %v870
        %v894 = vmul.f32 %v857, %v893
        %v903 = vrot.slane %v882, 7
        %vm904 = vcmask 1041409
        %v905 = vsel %vm904, %v903, %v880
        %v906 = vrot.slane %v884, 6
        %vm907 = vcmask 1042434
        %v908 = vsel %vm907, %v906, %v905
        %v909 = vrot.slane %v886, 5
        %vm910 = vcmask 1043459
        %v911 = vsel %vm910, %v909, %v908
        %v912 = vrot.slane %v888, 4
        %vm913 = vcmask 1044484
        %v914 = vsel %vm913, %v912, %v911
        %v915 = vrot.slane %v890, 3
        %vm916 = vcmask 1045509
        %v917 = vsel %vm916, %v915, %v914
        %v918 = vrot.slane %v892, 2
        %vm919 = vcmask 1046534
        %v920 = vsel %vm919, %v918, %v917
        %v921 = vrot.slane %v894, 1
        %vm922 = vcmask 1047559
        %v923 = vsel %vm922, %v921, %v920
        %925 = vst [vmem:[%s366] sm:$0xff] %v923
        %s926 = sand.u32 %s190, 1
        %s927 = scalar_lea.sflag [#allocation4], %s926
        %s928 = sand.u32 %s190, 1
        %s929 = smul.addr %s928, 8
        %s930 = scalar_lea.vmem [#allocation12], %s929
        // Predicated region
        $region65: #{tpu_custom_call.1} parent=43 // pred_check
          %p931 = pneg %p200
        $region66: #{tpu_custom_call.1} parent=43 // pred_check_branch
          %933 = sbr.rel (%p931) target = $region68
        $region67: #{tpu_custom_call.1} parent=43 // pred_region
          %s935 = ssub.s32 128, 128
          %936 = vsyncadd %s927, %s935
          %s937 = sadd.s32 %s33, %s32
          %s938 = smul.addr %s937, 128
          %s939 = scalar_lea.hbm %s6, %s938
          %s941 = sshll.u32 %s930, 4
          %s942 = int_to_ptr.vmem [resolvable:$true] %s941
          %944 = dma.vmem_to_hbm [thread:$0]  %s942, 128, %s939, %s927
        $region68: #{tpu_custom_call.1} parent=43 // pred_fallthru
          _
      $region44: #{tpu_custom_call.1} parent=5 // pred_fallthru
        _
      %p945 = scmp.le.s32.totalorder 2, %s23
      // Predicated region
      $region69: #{tpu_custom_call.1} parent=5 // pred_check
        %p946 = pneg %p945
      $region70: #{tpu_custom_call.1} parent=5 // pred_check_branch
        %948 = sbr.rel (%p946) target = $region72
      $region71: #{tpu_custom_call.1} parent=5 // pred_region
        %s949 = ssub.s32 %s23, 2
        // Predicated region
        $region73: #{tpu_custom_call.1} parent=71 // pred_check
          %p950 = pneg %p206
        $region74: #{tpu_custom_call.1} parent=71 // pred_check_branch
          %952 = sbr.rel (%p950) target = $region76
        $region75: #{tpu_custom_call.1} parent=71 // pred_region
          %s953 = sand.u32 %s191, 1
          %s954 = scalar_lea.sflag [#allocation4], %s953
          %s955 = sand.u32 %s191, 1
          %s956 = smul.addr %s955, 8
          %s957 = scalar_lea.vmem [#allocation12], %s956
          %958 = dma.done %s954, 128
        $region76: #{tpu_custom_call.1} parent=71 // pred_fallthru
          _
      $region72: #{tpu_custom_call.1} parent=5 // pred_fallthru
        _
    $region6: #{tpu_custom_call.1} parent=1 // loop_footer
      %s27 = sadd.s32 1, %s23
    $region7: #{tpu_custom_call.1} parent=1 // loop_footer_branch
      %22 = sbr.rel target = $region3
    $region8: #{tpu_custom_call.1} parent=1 // loop_exit
      _
    %959 = vsyncpa [#allocation3], 1
    %s960 = scalar_lea.sflag [#allocation3], 1
    %961 = vsyncpa %s960, 1
    %962 = vsyncpa [#allocation10], 1
    %s963 = scalar_lea.sflag [#allocation10], 1
    %964 = vsyncpa %s963, 1
    %965 = vsyncpa [#allocation4], 1
    %s966 = scalar_lea.sflag [#allocation4], 1
    %967 = vsyncpa %s966, 1
    %968 = vsyncpa [#allocation5], 1
    %s969 = scalar_lea.sflag [#allocation5], 1
    %970 = vsyncpa %s969, 1
    %971 = vsyncpa [#allocation6], 1
    %s972 = scalar_lea.sflag [#allocation6], 1
    %973 = vsyncpa %s972, 1

</llo_original>
